<compile_context>
chip_gen: v5e
topology: v5e:2x2
jax: 0.10.0
libtpu: 0.0.40
codegen_flags: <defaults>
</compile_context>

<pallas_src>
import jax
import jax.numpy as jnp
import numpy as np
from jax.experimental import pallas as pl
from jax.experimental.pallas import tpu as pltpu

EMBEDDING_SIZE = 128
ENGLISH_VOCAB_SIZE = 25
VOCAB_PAD = 128  # pad vocab to 128 so the one-hot gather is a lane-aligned MXU matmul


def _encoder_kernel(ids_ref, ep_ref, b_ref, whh_ref, out_ref, hn_ref):
    TB = ids_ref.shape[0]                 # T * B (time-major rows: row t*B + b)
    Vp = ep_ref.shape[0]                  # 128 (padded vocab)
    H2 = whh_ref.shape[0]                 # 2 * hidden
    P, B, _H4 = out_ref.shape             # (ceil(T/2), B, 4H)
    T = TB // B

    # ---- Embedding gather fused with input projection (single MXU matmul):
    #      onehot @ (emb @ W_ih)  ==  (onehot @ emb) @ W_ih
    ids = ids_ref[...]                                               # (T*B, 1) int32
    iota = jax.lax.broadcasted_iota(jnp.int32, (TB, Vp), 1)          # (T*B, Vp)
    onehot = (iota == ids).astype(jnp.float32)
    xproj = jnp.dot(onehot, ep_ref[...],
                    preferred_element_type=jnp.float32) + b_ref[...]  # (T*B, 2H)

    # ---- Fused bidirectional recurrence: carry h = [h_fwd | h_bwd_rev] (B, 2H)
    whh = whh_ref[...]                                               # (2H, 2H) block-diag
    lane = jax.lax.broadcasted_iota(jnp.int32, (B, H2), 1)
    is_fwd = lane < (H2 // 2)                                        # hoisted, reused

    def step(h, t):
        xf = xproj[t * B:(t + 1) * B, :]               # fwd inputs at time t
        xb = xproj[(T - 1 - t) * B:(T - t) * B, :]     # bwd inputs at time T-1-t
        x_t = jnp.where(is_fwd, xf, xb)                # (B, 2H), off the serial path
        return jnp.tanh(jnp.dot(h, whh, preferred_element_type=jnp.float32) + x_t)

    h = jnp.zeros((B, H2), jnp.float32)
    # Small static T -> trace-time unroll; stores interleaved with the recurrence,
    # two steps packed into one full 128-lane (B, 4H) store.
    for p in range(P):
        t0 = 2 * p
        h = step(h, t0)
        h0 = h
        if t0 + 1 < T:
            h = step(h, t0 + 1)
        h1 = h                                         # duplicate of h0 iff T is odd
        out_ref[p] = jnp.concatenate([h0, h1], axis=-1)  # (B, 4H) unmasked store

    # Final fused carry = [forward final | backward final] in one store.
    hn_ref[...] = h


def encoder_forward(x_ids, packed):
    B, T = x_ids.shape
    H2 = packed["whh_blk"].shape[0]
    H = H2 // 2
    P = (T + 1) // 2

    # time-major rows: row t*B + b  ==  x_ids[b, t]  (cheap host-side transform)
    ids_tm = x_ids.T.reshape(T * B, 1).astype(jnp.int32)

    vmem = pl.BlockSpec(memory_space=pltpu.MemorySpace.VMEM)
    out_shape = (jax.ShapeDtypeStruct((P, B, 4 * H), jnp.float32),   # paired steps
                 jax.ShapeDtypeStruct((B, H2), jnp.float32))         # fused final h

    out_pairs, hn_fused = pl.pallas_call(
        _encoder_kernel,
        out_shape=out_shape,
        in_specs=[vmem] * 4,
        out_specs=(vmem, vmem),
    )(ids_tm, packed["emb_proj"], packed["b_cat"], packed["whh_blk"])

    # ---- Layout plumbing (outside the kernel): unpack the lane-dense pair
    # layout back to torch's (B, T, 2H) / (2, B, H).
    # out_pairs[p, b] = [h_fwd(2p), h_bwd_rev(2p), h_fwd(2p+1), h_bwd_rev(2p+1)]
    r = out_pairs.reshape(P, B, 2, 2, H)                 # (pair, batch, j, dir, H)
    fwd = r[:, :, :, 0, :].transpose(1, 0, 2, 3).reshape(B, 2 * P, H)[:, :T, :]
    bwd = r[:, :, :, 1, :].transpose(1, 0, 2, 3).reshape(B, 2 * P, H)[:, :T, :][:, ::-1, :]
    out = jnp.concatenate([fwd, bwd], axis=-1)           # (B, T, 2H)
    hn = jnp.stack([hn_fused[:, :H], hn_fused[:, H:]], axis=0)  # (2, B, H)
    return out, hn


def init_params(key, hidden_size):
    """torch-like parameters (already pre-transposed: W^T), plus padded table."""
    ks = jax.random.split(key, 9)
    emb = jax.random.normal(ks[0], (ENGLISH_VOCAB_SIZE, EMBEDDING_SIZE), jnp.float32)
    emb_pad = jnp.zeros((VOCAB_PAD, EMBEDDING_SIZE), jnp.float32)
    emb_pad = emb_pad.at[:ENGLISH_VOCAB_SIZE].set(emb)

    bound = 1.0 / np.sqrt(hidden_size)
    u = lambda k, shape: jax.random.uniform(k, shape, jnp.float32, -bound, bound)
    # torch layout: weight_ih_l0 (H, E), weight_hh_l0 (H, H), biases (H,)
    wih_f = u(ks[1], (hidden_size, EMBEDDING_SIZE))
    whh_f = u(ks[2], (hidden_size, hidden_size))
    b_f = u(ks[3], (hidden_size,)) + u(ks[4], (hidden_size,))          # b_ih + b_hh
    wih_b = u(ks[5], (hidden_size, EMBEDDING_SIZE))
    whh_b = u(ks[6], (hidden_size, hidden_size))
    b_b = u(ks[7], (hidden_size,)) + u(ks[8], (hidden_size,))
    return dict(
        emb=emb_pad,
        wih_f=wih_f.T, whh_f=whh_f.T, b_f=b_f.reshape(1, -1),
        wih_b=wih_b.T, whh_b=whh_b.T, b_b=b_b.reshape(1, -1),
    )


def pack_params(p):
    """Build fused kernel operands (done once, outside the kernel)."""
    H = p["whh_f"].shape[0]
    hi = jax.lax.Precision.HIGHEST
    wih_cat = jnp.concatenate([p["wih_f"], p["wih_b"]], axis=1)        # (E, 2H)
    # Fold W_ih into the padded embedding table (associativity of the one-hot gather).
    emb_proj = jnp.dot(p["emb"], wih_cat, precision=hi)                # (VOCAB_PAD, 2H)
    b_cat = jnp.concatenate([p["b_f"], p["b_b"]], axis=1)              # (1, 2H)
    whh_blk = jnp.zeros((2 * H, 2 * H), jnp.float32)
    whh_blk = whh_blk.at[:H, :H].set(p["whh_f"]).at[H:, H:].set(p["whh_b"])
    return dict(emb_proj=emb_proj, b_cat=b_cat, whh_blk=whh_blk)


def reference_forward(x_ids, params):
    # Pure-JAX reference replicating torch.nn.RNN(bidirectional, batch_first).
    hi = jax.lax.Precision.HIGHEST
    emb = params["emb"][x_ids]                                         # (B, T, E)
    B, T, _ = emb.shape
    H = params["whh_f"].shape[0]

    def run(wih, whh, bias, t_order):
        h = jnp.zeros((B, H), jnp.float32)
        outs = [None] * T
        for t in t_order:
            h = jnp.tanh(jnp.dot(emb[:, t, :], wih, precision=hi)
                         + jnp.dot(h, whh, precision=hi) + bias)
            outs[t] = h
        return jnp.stack(outs, axis=1), h

    fwd, hf = run(params["wih_f"], params["whh_f"], params["b_f"], range(T))
    bwd, hb = run(params["wih_b"], params["whh_b"], params["b_b"], range(T - 1, -1, -1))
    out = jnp.concatenate([fwd, bwd], axis=2)
    hn = jnp.stack([hf, hb], axis=0)
    return out, hn


if __name__ == "__main__":
    B, T, HIDDEN = 8, 8, 32   # B=8 fills the 8 vreg sublanes (perf feedback)
    key = jax.random.PRNGKey(0)
    k_ids, k_params = jax.random.split(key)

    x_ids = jax.random.randint(k_ids, (B, T), 0, ENGLISH_VOCAB_SIZE, dtype=jnp.int32)
    params = init_params(k_params, HIDDEN)
    packed = pack_params(params)

    out, hn = encoder_forward(x_ids, packed)
    jax.block_until_ready((out, hn))

    ref_out, ref_hn = reference_forward(x_ids, params)
    assert out.shape == (B, T, 2 * HIDDEN) and hn.shape == (2, B, HIDDEN)
    np.testing.assert_allclose(np.asarray(out), np.asarray(ref_out), atol=2e-3, rtol=2e-3)
    np.testing.assert_allclose(np.asarray(hn), np.asarray(ref_hn), atol=2e-3, rtol=2e-3)

    print("KERNEL_OK")
</pallas_src>

<mosaic_0001>
module attributes {stable_mosaic.version = 11 : i64} {
  func.func @_encoder_kernel(%arg0: memref<64x1xi32, #tpu.memory_space<vmem>>, %arg1: memref<128x64xf32, #tpu.memory_space<vmem>>, %arg2: memref<1x64xf32, #tpu.memory_space<vmem>>, %arg3: memref<64x64xf32, #tpu.memory_space<vmem>>, %arg4: memref<4x8x128xf32, #tpu.memory_space<vmem>>, %arg5: memref<8x64xf32, #tpu.memory_space<vmem>>) attributes {dimension_semantics = [], scalar_prefetch = 0 : i64, scratch_operands = 0 : i64, tpu.core_type = #tpu.core_type<tc>} {
    %c0 = arith.constant 0 : index
    %c0_0 = arith.constant 0 : index
    %0 = vector.load %arg0[%c0, %c0_0] : memref<64x1xi32, #tpu.memory_space<vmem>>, vector<64x1xi32>
    %1 = tpu.iota {dimensions = array<i32: 1>} : vector<64x128xi32>
    %2 = vector.broadcast %0 : vector<64x1xi32> to vector<64x128xi32>
    %3 = arith.cmpi eq, %1, %2 : vector<64x128xi32>
    %4 = arith.extui %3 : vector<64x128xi1> to vector<64x128xi32>
    %5 = arith.sitofp %4 : vector<64x128xi32> to vector<64x128xf32>
    %c0_1 = arith.constant 0 : index
    %c0_2 = arith.constant 0 : index
    %6 = vector.load %arg1[%c0_1, %c0_2] : memref<128x64xf32, #tpu.memory_space<vmem>>, vector<128x64xf32>
    %cst = arith.constant dense<0.000000e+00> : vector<64x64xf32>
    %7 = tpu.matmul %5, %6, %cst {dimension_numbers = #tpu.dot_dimension_numbers<[1], [0], [0], [1], [0, 0, 1, 1], [], []>} : vector<64x128xf32>, vector<128x64xf32>, vector<64x64xf32> -> vector<64x64xf32>
    %c0_3 = arith.constant 0 : index
    %c0_4 = arith.constant 0 : index
    %8 = vector.load %arg2[%c0_3, %c0_4] : memref<1x64xf32, #tpu.memory_space<vmem>>, vector<1x64xf32>
    %9 = vector.broadcast %8 : vector<1x64xf32> to vector<64x64xf32>
    %10 = arith.addf %7, %9 : vector<64x64xf32>
    %c0_5 = arith.constant 0 : index
    %c0_6 = arith.constant 0 : index
    %11 = vector.load %arg3[%c0_5, %c0_6] : memref<64x64xf32, #tpu.memory_space<vmem>>, vector<64x64xf32>
    %12 = tpu.iota {dimensions = array<i32: 1>} : vector<8x64xi32>
    %c32_i32 = arith.constant 32 : i32
    %13 = vector.broadcast %c32_i32 : i32 to vector<8x64xi32>
    %14 = arith.cmpi slt, %12, %13 : vector<8x64xi32>
    %cst_7 = arith.constant 0.000000e+00 : f32
    %15 = vector.broadcast %cst_7 : f32 to vector<8x64xf32>
    %16 = vector.extract_strided_slice %10 {offsets = [0, 0], sizes = [8, 64], strides = [1, 1]} : vector<64x64xf32> to vector<8x64xf32>
    %17 = vector.extract_strided_slice %10 {offsets = [56, 0], sizes = [8, 64], strides = [1, 1]} : vector<64x64xf32> to vector<8x64xf32>
    %18 = arith.select %14, %16, %17 : vector<8x64xi1>, vector<8x64xf32>
    %cst_8 = arith.constant dense<0.000000e+00> : vector<8x64xf32>
    %19 = tpu.matmul %15, %11, %cst_8 {dimension_numbers = #tpu.dot_dimension_numbers<[1], [0], [0], [1], [0, 0, 1, 1], [], []>} : vector<8x64xf32>, vector<64x64xf32>, vector<8x64xf32> -> vector<8x64xf32>
    %20 = arith.addf %19, %18 : vector<8x64xf32>
    %21 = math.tanh %20 : vector<8x64xf32>
    %22 = vector.extract_strided_slice %10 {offsets = [8, 0], sizes = [8, 64], strides = [1, 1]} : vector<64x64xf32> to vector<8x64xf32>
    %23 = vector.extract_strided_slice %10 {offsets = [48, 0], sizes = [8, 64], strides = [1, 1]} : vector<64x64xf32> to vector<8x64xf32>
    %24 = arith.select %14, %22, %23 : vector<8x64xi1>, vector<8x64xf32>
    %cst_9 = arith.constant dense<0.000000e+00> : vector<8x64xf32>
    %25 = tpu.matmul %21, %11, %cst_9 {dimension_numbers = #tpu.dot_dimension_numbers<[1], [0], [0], [1], [0, 0, 1, 1], [], []>} : vector<8x64xf32>, vector<64x64xf32>, vector<8x64xf32> -> vector<8x64xf32>
    %26 = arith.addf %25, %24 : vector<8x64xf32>
    %27 = math.tanh %26 : vector<8x64xf32>
    %28 = tpu.concatenate %21, %27 in 1 : vector<8x64xf32>, vector<8x64xf32> -> vector<8x128xf32>
    %c0_10 = arith.constant 0 : index
    %c0_11 = arith.constant 0 : index
    %c0_12 = arith.constant 0 : index
    %29 = vector.load %arg4[%c0_10, %c0_11, %c0_12] : memref<4x8x128xf32, #tpu.memory_space<vmem>>, vector<1x8x128xf32>
    %30 = vector.shape_cast %29 : vector<1x8x128xf32> to vector<8x128xf32>
    %31 = vector.shape_cast %28 : vector<8x128xf32> to vector<1x8x128xf32>
    tpu.vector_store %arg4[%c0_10, %c0_11, %c0_12], %31 {strides = array<i32>} : memref<4x8x128xf32, #tpu.memory_space<vmem>>, vector<1x8x128xf32>,
    %32 = vector.extract_strided_slice %10 {offsets = [16, 0], sizes = [8, 64], strides = [1, 1]} : vector<64x64xf32> to vector<8x64xf32>
    %33 = vector.extract_strided_slice %10 {offsets = [40, 0], sizes = [8, 64], strides = [1, 1]} : vector<64x64xf32> to vector<8x64xf32>
    %34 = arith.select %14, %32, %33 : vector<8x64xi1>, vector<8x64xf32>
    %cst_13 = arith.constant dense<0.000000e+00> : vector<8x64xf32>
    %35 = tpu.matmul %27, %11, %cst_13 {dimension_numbers = #tpu.dot_dimension_numbers<[1], [0], [0], [1], [0, 0, 1, 1], [], []>} : vector<8x64xf32>, vector<64x64xf32>, vector<8x64xf32> -> vector<8x64xf32>
    %36 = arith.addf %35, %34 : vector<8x64xf32>
    %37 = math.tanh %36 : vector<8x64xf32>
    %38 = vector.extract_strided_slice %10 {offsets = [24, 0], sizes = [8, 64], strides = [1, 1]} : vector<64x64xf32> to vector<8x64xf32>
    %39 = vector.extract_strided_slice %10 {offsets = [32, 0], sizes = [8, 64], strides = [1, 1]} : vector<64x64xf32> to vector<8x64xf32>
    %40 = arith.select %14, %38, %39 : vector<8x64xi1>, vector<8x64xf32>
    %cst_14 = arith.constant dense<0.000000e+00> : vector<8x64xf32>
    %41 = tpu.matmul %37, %11, %cst_14 {dimension_numbers = #tpu.dot_dimension_numbers<[1], [0], [0], [1], [0, 0, 1, 1], [], []>} : vector<8x64xf32>, vector<64x64xf32>, vector<8x64xf32> -> vector<8x64xf32>
    %42 = arith.addf %41, %40 : vector<8x64xf32>
    %43 = math.tanh %42 : vector<8x64xf32>
    %44 = tpu.concatenate %37, %43 in 1 : vector<8x64xf32>, vector<8x64xf32> -> vector<8x128xf32>
    %c1 = arith.constant 1 : index
    %c0_15 = arith.constant 0 : index
    %c0_16 = arith.constant 0 : index
    %45 = vector.load %arg4[%c1, %c0_15, %c0_16] : memref<4x8x128xf32, #tpu.memory_space<vmem>>, vector<1x8x128xf32>
    %46 = vector.shape_cast %45 : vector<1x8x128xf32> to vector<8x128xf32>
    %47 = vector.shape_cast %44 : vector<8x128xf32> to vector<1x8x128xf32>
    tpu.vector_store %arg4[%c1, %c0_15, %c0_16], %47 {strides = array<i32>} : memref<4x8x128xf32, #tpu.memory_space<vmem>>, vector<1x8x128xf32>,
    %48 = vector.extract_strided_slice %10 {offsets = [32, 0], sizes = [8, 64], strides = [1, 1]} : vector<64x64xf32> to vector<8x64xf32>
    %49 = vector.extract_strided_slice %10 {offsets = [24, 0], sizes = [8, 64], strides = [1, 1]} : vector<64x64xf32> to vector<8x64xf32>
    %50 = arith.select %14, %48, %49 : vector<8x64xi1>, vector<8x64xf32>
    %cst_17 = arith.constant dense<0.000000e+00> : vector<8x64xf32>
    %51 = tpu.matmul %43, %11, %cst_17 {dimension_numbers = #tpu.dot_dimension_numbers<[1], [0], [0], [1], [0, 0, 1, 1], [], []>} : vector<8x64xf32>, vector<64x64xf32>, vector<8x64xf32> -> vector<8x64xf32>
    %52 = arith.addf %51, %50 : vector<8x64xf32>
    %53 = math.tanh %52 : vector<8x64xf32>
    %54 = vector.extract_strided_slice %10 {offsets = [40, 0], sizes = [8, 64], strides = [1, 1]} : vector<64x64xf32> to vector<8x64xf32>
    %55 = vector.extract_strided_slice %10 {offsets = [16, 0], sizes = [8, 64], strides = [1, 1]} : vector<64x64xf32> to vector<8x64xf32>
    %56 = arith.select %14, %54, %55 : vector<8x64xi1>, vector<8x64xf32>
    %cst_18 = arith.constant dense<0.000000e+00> : vector<8x64xf32>
    %57 = tpu.matmul %53, %11, %cst_18 {dimension_numbers = #tpu.dot_dimension_numbers<[1], [0], [0], [1], [0, 0, 1, 1], [], []>} : vector<8x64xf32>, vector<64x64xf32>, vector<8x64xf32> -> vector<8x64xf32>
    %58 = arith.addf %57, %56 : vector<8x64xf32>
    %59 = math.tanh %58 : vector<8x64xf32>
    %60 = tpu.concatenate %53, %59 in 1 : vector<8x64xf32>, vector<8x64xf32> -> vector<8x128xf32>
    %c2 = arith.constant 2 : index
    %c0_19 = arith.constant 0 : index
    %c0_20 = arith.constant 0 : index
    %61 = vector.load %arg4[%c2, %c0_19, %c0_20] : memref<4x8x128xf32, #tpu.memory_space<vmem>>, vector<1x8x128xf32>
    %62 = vector.shape_cast %61 : vector<1x8x128xf32> to vector<8x128xf32>
    %63 = vector.shape_cast %60 : vector<8x128xf32> to vector<1x8x128xf32>
    tpu.vector_store %arg4[%c2, %c0_19, %c0_20], %63 {strides = array<i32>} : memref<4x8x128xf32, #tpu.memory_space<vmem>>, vector<1x8x128xf32>,
    %64 = vector.extract_strided_slice %10 {offsets = [48, 0], sizes = [8, 64], strides = [1, 1]} : vector<64x64xf32> to vector<8x64xf32>
    %65 = vector.extract_strided_slice %10 {offsets = [8, 0], sizes = [8, 64], strides = [1, 1]} : vector<64x64xf32> to vector<8x64xf32>
    %66 = arith.select %14, %64, %65 : vector<8x64xi1>, vector<8x64xf32>
    %cst_21 = arith.constant dense<0.000000e+00> : vector<8x64xf32>
    %67 = tpu.matmul %59, %11, %cst_21 {dimension_numbers = #tpu.dot_dimension_numbers<[1], [0], [0], [1], [0, 0, 1, 1], [], []>} : vector<8x64xf32>, vector<64x64xf32>, vector<8x64xf32> -> vector<8x64xf32>
    %68 = arith.addf %67, %66 : vector<8x64xf32>
    %69 = math.tanh %68 : vector<8x64xf32>
    %70 = vector.extract_strided_slice %10 {offsets = [56, 0], sizes = [8, 64], strides = [1, 1]} : vector<64x64xf32> to vector<8x64xf32>
    %71 = vector.extract_strided_slice %10 {offsets = [0, 0], sizes = [8, 64], strides = [1, 1]} : vector<64x64xf32> to vector<8x64xf32>
    %72 = arith.select %14, %70, %71 : vector<8x64xi1>, vector<8x64xf32>
    %cst_22 = arith.constant dense<0.000000e+00> : vector<8x64xf32>
    %73 = tpu.matmul %69, %11, %cst_22 {dimension_numbers = #tpu.dot_dimension_numbers<[1], [0], [0], [1], [0, 0, 1, 1], [], []>} : vector<8x64xf32>, vector<64x64xf32>, vector<8x64xf32> -> vector<8x64xf32>
    %74 = arith.addf %73, %72 : vector<8x64xf32>
    %75 = math.tanh %74 : vector<8x64xf32>
    %76 = tpu.concatenate %69, %75 in 1 : vector<8x64xf32>, vector<8x64xf32> -> vector<8x128xf32>
    %c3 = arith.constant 3 : index
    %c0_23 = arith.constant 0 : index
    %c0_24 = arith.constant 0 : index
    %77 = vector.load %arg4[%c3, %c0_23, %c0_24] : memref<4x8x128xf32, #tpu.memory_space<vmem>>, vector<1x8x128xf32>
    %78 = vector.shape_cast %77 : vector<1x8x128xf32> to vector<8x128xf32>
    %79 = vector.shape_cast %76 : vector<8x128xf32> to vector<1x8x128xf32>
    tpu.vector_store %arg4[%c3, %c0_23, %c0_24], %79 {strides = array<i32>} : memref<4x8x128xf32, #tpu.memory_space<vmem>>, vector<1x8x128xf32>,
    %c0_25 = arith.constant 0 : index
    %c0_26 = arith.constant 0 : index
    %80 = vector.load %arg5[%c0_25, %c0_26] : memref<8x64xf32, #tpu.memory_space<vmem>>, vector<8x64xf32>
    tpu.vector_store %arg5[%c0_25, %c0_26], %75 {strides = array<i32>} : memref<8x64xf32, #tpu.memory_space<vmem>>, vector<8x64xf32>,
    return
  }
}

</mosaic_0001>

<llo_original>
// kernel: tpu_custom_call.1
$region0: #{tpu_custom_call.1}
  #allocation0 [shape = 'u32[]', space=smem, size = 0x4, offset = 0x4, fixed_abs, tag = 'smem constant byte address 0x4 - core index']
  #allocation1 [shape = 'u32[72,128]{1,0:T(1,128)}', space=vmem, size = 0x9000, scoped, tag = 'internal scratch']
  %s0 = inlined_call_operand.vmem [shape: s32[64,1], index: 0, kind: input, shape index: {}]
  %s1 = inlined_call_operand.vmem [shape: f32[128,64], index: 1, kind: input, shape index: {}]
  %s2 = inlined_call_operand.vmem [shape: f32[1,64], index: 2, kind: input, shape index: {}]
  %s3 = inlined_call_operand.vmem [shape: f32[64,64], index: 3, kind: input, shape index: {}]
  %s4 = inlined_call_operand.hbm [shape: f32[4,8,128], index: 4, kind: output, shape index: {0}]
  %s5 = inlined_call_operand.hbm [shape: f32[8,64], index: 5, kind: output, shape index: {1}]
  %6 = xla_tuple %s4, %s5
  %s7 = sld [smem:[#allocation0]]
  $region34: #{tpu_custom_call.1} parent=0
    _
  %s9 = ssub.s32 1, %s7
  %s10 = scalar_select 0, %s9, %s7
  $region1: #{tpu_custom_call.1} parent=0
    #allocation2 [shape = 'u8[16384]{0}', space=vmem, size = 0x4000, scoped, tag = 'output window, operand 0, single buffered']
    #allocation3 [shape = 's32[1]{0}', space=sflag, size = 0x4, scoped, tag = 'scoped memory for tpu_custom_call.1']
    #allocation4 [shape = 'u8[4096]{0}', space=vmem, size = 0x1000, scoped, tag = 'output window, operand 1, single buffered']
    #allocation5 [shape = 's32[1]{0}', space=sflag, size = 0x4, scoped, tag = 'scoped memory for tpu_custom_call.1']
    %11 = vsyncpa [#allocation3], 0
    %12 = vsyncpa [#allocation5], 0
    // Predicated region
    $region2: #{tpu_custom_call.1} parent=1 // pred_check
      _
    $region3: #{tpu_custom_call.1} parent=1 // pred_check_branch
      %14 = sbr.rel (0) target = $region5
    $region4: #{tpu_custom_call.1} parent=1 // pred_region
      _
    $region5: #{tpu_custom_call.1} parent=1 // pred_fallthru
      _
    // Predicated region
    $region6: #{tpu_custom_call.1} parent=1 // pred_check
      _
    $region7: #{tpu_custom_call.1} parent=1 // pred_check_branch
      %16 = sbr.rel (0) target = $region9
    $region8: #{tpu_custom_call.1} parent=1 // pred_region
      _
    $region9: #{tpu_custom_call.1} parent=1 // pred_fallthru
      _
    // Predicated region
    $region10: #{tpu_custom_call.1} parent=1 // pred_check
      _
    $region11: #{tpu_custom_call.1} parent=1 // pred_check_branch
      %18 = sbr.rel (0) target = $region13
    $region12: #{tpu_custom_call.1} parent=1 // pred_region
      _
    $region13: #{tpu_custom_call.1} parent=1 // pred_fallthru
      _
    // Predicated region
    $region14: #{tpu_custom_call.1} parent=1 // pred_check
      _
    $region15: #{tpu_custom_call.1} parent=1 // pred_check_branch
      %20 = sbr.rel (0) target = $region17
    $region16: #{tpu_custom_call.1} parent=1 // pred_region
      _
    $region17: #{tpu_custom_call.1} parent=1 // pred_fallthru
      _
    %v21 = vld [vmem:[%s0] sm:$0xff]
    %v22 = vld [vmem:[%s0 + $0x8] sm:$0xff]
    %v23 = vld [vmem:[%s0 + $0x10] sm:$0xff]
    %v24 = vld [vmem:[%s0 + $0x18] sm:$0xff]
    %v25 = vld [vmem:[%s0 + $0x20] sm:$0xff]
    %v26 = vld [vmem:[%s0 + $0x28] sm:$0xff]
    %v27 = vld [vmem:[%s0 + $0x30] sm:$0xff]
    %v28 = vld [vmem:[%s0 + $0x38] sm:$0xff]
    %v29 = vlaneseq
    %v30 = vand.u32 %v29, 127
    %31 = vset.pattern.permute.xlu0 0
    %32 = vperm.xlu0 %31, %v21
    %v33 = vpop.permute.xlu0 %32
    %34 = vset.pattern.permute.xlu0 0
    %35 = vperm.xlu0 %34, %v22
    %v36 = vpop.permute.xlu0 %35
    %37 = vset.pattern.permute.xlu0 0
    %38 = vperm.xlu0 %37, %v23
    %v39 = vpop.permute.xlu0 %38
    %40 = vset.pattern.permute.xlu0 0
    %41 = vperm.xlu0 %40, %v24
    %v42 = vpop.permute.xlu0 %41
    %43 = vset.pattern.permute.xlu0 0
    %44 = vperm.xlu0 %43, %v25
    %v45 = vpop.permute.xlu0 %44
    %46 = vset.pattern.permute.xlu0 0
    %47 = vperm.xlu0 %46, %v26
    %v48 = vpop.permute.xlu0 %47
    %49 = vset.pattern.permute.xlu0 0
    %50 = vperm.xlu0 %49, %v27
    %v51 = vpop.permute.xlu0 %50
    %52 = vset.pattern.permute.xlu0 0
    %53 = vperm.xlu0 %52, %v28
    %v54 = vpop.permute.xlu0 %53
    %vm55 = vcmp.eq.s32.totalorder %v30, %v33
    %vm56 = vcmp.eq.s32.totalorder %v30, %v36
    %vm57 = vcmp.eq.s32.totalorder %v30, %v39
    %vm58 = vcmp.eq.s32.totalorder %v30, %v42
    %vm59 = vcmp.eq.s32.totalorder %v30, %v45
    %vm60 = vcmp.eq.s32.totalorder %v30, %v48
    %vm61 = vcmp.eq.s32.totalorder %v30, %v51
    %vm62 = vcmp.eq.s32.totalorder %v30, %v54
    %v63 = vsel %vm55, 1, 0
    %v64 = vsel %vm56, 1, 0
    %v65 = vsel %vm57, 1, 0
    %v66 = vsel %vm58, 1, 0
    %v67 = vsel %vm59, 1, 0
    %v68 = vsel %vm60, 1, 0
    %v69 = vsel %vm61, 1, 0
    %v70 = vsel %vm62, 1, 0
    %v71 = vcvt.s32.f32 %v63
    %v72 = vcvt.s32.f32 %v64
    %v73 = vcvt.s32.f32 %v65
    %v74 = vcvt.s32.f32 %v66
    %v75 = vcvt.s32.f32 %v67
    %v76 = vcvt.s32.f32 %v68
    %v77 = vcvt.s32.f32 %v69
    %v78 = vcvt.s32.f32 %v70
    %v79 = vld [vmem:[%s1] sm:$0xff]
    %v80 = vld [vmem:[%s1 + $0x8] sm:$0xff]
    %v81 = vld [vmem:[%s1 + $0x10] sm:$0xff]
    %v82 = vld [vmem:[%s1 + $0x18] sm:$0xff]
    %v83 = vld [vmem:[%s1 + $0x20] sm:$0xff]
    %v84 = vld [vmem:[%s1 + $0x28] sm:$0xff]
    %v85 = vld [vmem:[%s1 + $0x30] sm:$0xff]
    %v86 = vld [vmem:[%s1 + $0x38] sm:$0xff]
    %v87 = vld [vmem:[%s1 + $0x40] sm:$0xff]
    %v88 = vld [vmem:[%s1 + $0x48] sm:$0xff]
    %v89 = vld [vmem:[%s1 + $0x50] sm:$0xff]
    %v90 = vld [vmem:[%s1 + $0x58] sm:$0xff]
    %v91 = vld [vmem:[%s1 + $0x60] sm:$0xff]
    %v92 = vld [vmem:[%s1 + $0x68] sm:$0xff]
    %v93 = vld [vmem:[%s1 + $0x70] sm:$0xff]
    %v94 = vld [vmem:[%s1 + $0x78] sm:$0xff]
    %v95 = vld [vmem:[%s2] sm:$0x1]
    %v97 = vperm.slane %v95, 0
    %99 = vmatpush.msra.mxu0 %v94
    %100 = vmatpush.msra.mxu0 %v93
    %101 = vmatpush.msra.mxu0 %v92
    %102 = vmatpush.msra.mxu0 %v91
    %103 = vmatpush.msra.mxu0 %v90
    %104 = vmatpush.msra.mxu0 %v89
    %105 = vmatpush.msra.mxu0 %v88
    %106 = vmatpush.msra.mxu0 %v87
    %107 = vmatpush.msra.mxu0 %v86
    %108 = vmatpush.msra.mxu0 %v85
    %109 = vmatpush.msra.mxu0 %v84
    %110 = vmatpush.msra.mxu0 %v83
    %111 = vmatpush.msra.mxu0 %v82
    %112 = vmatpush.msra.mxu0 %v81
    %113 = vmatpush.msra.mxu0 %v80
    %114 = vmatpush.msra.mxu0 %v79
    %115 = vmatmul.f32.gmra.mxu0 %v71
    %v116 = vpop.f32.mrf.mxu0
    %v117 = vadd.f32 %v97, %v116
    %118 = vmatmul.f32.gmra.mxu0 %v72
    %v119 = vpop.f32.mrf.mxu0
    %v120 = vadd.f32 %v97, %v119
    %121 = vmatmul.f32.gmra.mxu0 %v73
    %v122 = vpop.f32.mrf.mxu0
    %v123 = vadd.f32 %v97, %v122
    %124 = vmatmul.f32.gmra.mxu0 %v74
    %v125 = vpop.f32.mrf.mxu0
    %v126 = vadd.f32 %v97, %v125
    %127 = vmatmul.f32.gmra.mxu0 %v75
    %v128 = vpop.f32.mrf.mxu0
    %v129 = vadd.f32 %v97, %v128
    %130 = vmatmul.f32.gmra.mxu0 %v76
    %v131 = vpop.f32.mrf.mxu0
    %v132 = vadd.f32 %v97, %v131
    %133 = vmatmul.f32.gmra.mxu0 %v77
    %v134 = vpop.f32.mrf.mxu0
    %v135 = vadd.f32 %v97, %v134
    %136 = vmatmul.f32.gmra.mxu0 %v78
    %v137 = vpop.f32.mrf.mxu0
    %v138 = vadd.f32 %v97, %v137
    %139 = vdwg.mxu0
    %v140 = vld [vmem:[%s3] sm:$0xff]
    %v141 = vld [vmem:[%s3 + $0x8] sm:$0xff]
    %v142 = vld [vmem:[%s3 + $0x10] sm:$0xff]
    %v143 = vld [vmem:[%s3 + $0x18] sm:$0xff]
    %v144 = vld [vmem:[%s3 + $0x20] sm:$0xff]
    %v145 = vld [vmem:[%s3 + $0x28] sm:$0xff]
    %v146 = vld [vmem:[%s3 + $0x30] sm:$0xff]
    %v147 = vld [vmem:[%s3 + $0x38] sm:$0xff]
    %vm148 = vcmp.lt.s32.totalorder %v30, 32
    %v149 = vsel %vm148, %v117, %v138
    %vm150 = vcmask 523264
    %v152 = vsel %vm150, 0.0, 0
    %154 = vmatpush.msra.mxu0 0.0
    %155 = vmatpush.msra.mxu0 0.0
    %156 = vmatpush.msra.mxu0 0.0
    %157 = vmatpush.msra.mxu0 0.0
    %158 = vmatpush.msra.mxu0 0.0
    %159 = vmatpush.msra.mxu0 0.0
    %160 = vmatpush.msra.mxu0 0.0
    %161 = vmatpush.msra.mxu0 0.0
    %162 = vmatpush.msra.mxu0 %v147
    %163 = vmatpush.msra.mxu0 %v146
    %164 = vmatpush.msra.mxu0 %v145
    %165 = vmatpush.msra.mxu0 %v144
    %166 = vmatpush.msra.mxu0 %v143
    %167 = vmatpush.msra.mxu0 %v142
    %168 = vmatpush.msra.mxu0 %v141
    %169 = vmatpush.msra.mxu0 %v140
    %170 = vmatmul.f32.gmra.mxu0 %v152
    %v171 = vpop.f32.mrf.mxu0
    %v172 = vadd.f32 %v149, %v171
    %173 = vdwg.mxu0
    %v174 = vtanh.pop %v172
    %v175 = vsel %vm148, %v120, %v135
    %v177 = vsel %vm150, %v174, 0
    %179 = vmatpush.msra.mxu0 0.0
    %180 = vmatpush.msra.mxu0 0.0
    %181 = vmatpush.msra.mxu0 0.0
    %182 = vmatpush.msra.mxu0 0.0
    %183 = vmatpush.msra.mxu0 0.0
    %184 = vmatpush.msra.mxu0 0.0
    %185 = vmatpush.msra.mxu0 0.0
    %186 = vmatpush.msra.mxu0 0.0
    %187 = vmatpush.msra.mxu0 %v147
    %188 = vmatpush.msra.mxu0 %v146
    %189 = vmatpush.msra.mxu0 %v145
    %190 = vmatpush.msra.mxu0 %v144
    %191 = vmatpush.msra.mxu0 %v143
    %192 = vmatpush.msra.mxu0 %v142
    %193 = vmatpush.msra.mxu0 %v141
    %194 = vmatpush.msra.mxu0 %v140
    %195 = vmatmul.f32.gmra.mxu0 %v177
    %v196 = vpop.f32.mrf.mxu0
    %v197 = vadd.f32 %v175, %v196
    %198 = vdwg.mxu0
    %v199 = vtanh.pop %v197
    %201 = vrot.lane.b32.xlu0 %v199, 64
    %v202 = vpop.permute.xlu0 %201
    %v204 = vsel %vm150, %v174, %v202
    %205 = vst [vmem:[#allocation2] sm:$0xff] %v204
    %v206 = vsel %vm148, %v123, %v132
    %v207 = vsel %vm150, %v199, 0
    %209 = vmatpush.msra.mxu0 0.0
    %210 = vmatpush.msra.mxu0 0.0
    %211 = vmatpush.msra.mxu0 0.0
    %212 = vmatpush.msra.mxu0 0.0
    %213 = vmatpush.msra.mxu0 0.0
    %214 = vmatpush.msra.mxu0 0.0
    %215 = vmatpush.msra.mxu0 0.0
    %216 = vmatpush.msra.mxu0 0.0
    %217 = vmatpush.msra.mxu0 %v147
    %218 = vmatpush.msra.mxu0 %v146
    %219 = vmatpush.msra.mxu0 %v145
    %220 = vmatpush.msra.mxu0 %v144
    %221 = vmatpush.msra.mxu0 %v143
    %222 = vmatpush.msra.mxu0 %v142
    %223 = vmatpush.msra.mxu0 %v141
    %224 = vmatpush.msra.mxu0 %v140
    %225 = vmatmul.f32.gmra.mxu0 %v207
    %v226 = vpop.f32.mrf.mxu0
    %v227 = vadd.f32 %v206, %v226
    %228 = vdwg.mxu0
    %v229 = vtanh.pop %v227
    %v230 = vsel %vm148, %v126, %v129
    %v232 = vsel %vm150, %v229, 0
    %234 = vmatpush.msra.mxu0 0.0
    %235 = vmatpush.msra.mxu0 0.0
    %236 = vmatpush.msra.mxu0 0.0
    %237 = vmatpush.msra.mxu0 0.0
    %238 = vmatpush.msra.mxu0 0.0
    %239 = vmatpush.msra.mxu0 0.0
    %240 = vmatpush.msra.mxu0 0.0
    %241 = vmatpush.msra.mxu0 0.0
    %242 = vmatpush.msra.mxu0 %v147
    %243 = vmatpush.msra.mxu0 %v146
    %244 = vmatpush.msra.mxu0 %v145
    %245 = vmatpush.msra.mxu0 %v144
    %246 = vmatpush.msra.mxu0 %v143
    %247 = vmatpush.msra.mxu0 %v142
    %248 = vmatpush.msra.mxu0 %v141
    %249 = vmatpush.msra.mxu0 %v140
    %250 = vmatmul.f32.gmra.mxu0 %v232
    %v251 = vpop.f32.mrf.mxu0
    %v252 = vadd.f32 %v230, %v251
    %253 = vdwg.mxu0
    %v254 = vtanh.pop %v252
    %256 = vrot.lane.b32.xlu0 %v254, 64
    %v257 = vpop.permute.xlu0 %256
    %v259 = vsel %vm150, %v229, %v257
    %s260 = scalar_lea.vmem [#allocation2], 8
    %261 = vst [vmem:[%s260] sm:$0xff] %v259
    %v262 = vsel %vm148, %v129, %v126
    %v263 = vsel %vm150, %v254, 0
    %265 = vmatpush.msra.mxu0 0.0
    %266 = vmatpush.msra.mxu0 0.0
    %267 = vmatpush.msra.mxu0 0.0
    %268 = vmatpush.msra.mxu0 0.0
    %269 = vmatpush.msra.mxu0 0.0
    %270 = vmatpush.msra.mxu0 0.0
    %271 = vmatpush.msra.mxu0 0.0
    %272 = vmatpush.msra.mxu0 0.0
    %273 = vmatpush.msra.mxu0 %v147
    %274 = vmatpush.msra.mxu0 %v146
    %275 = vmatpush.msra.mxu0 %v145
    %276 = vmatpush.msra.mxu0 %v144
    %277 = vmatpush.msra.mxu0 %v143
    %278 = vmatpush.msra.mxu0 %v142
    %279 = vmatpush.msra.mxu0 %v141
    %280 = vmatpush.msra.mxu0 %v140
    %281 = vmatmul.f32.gmra.mxu0 %v263
    %v282 = vpop.f32.mrf.mxu0
    %v283 = vadd.f32 %v262, %v282
    %284 = vdwg.mxu0
    %v285 = vtanh.pop %v283
    %v286 = vsel %vm148, %v132, %v123
    %v288 = vsel %vm150, %v285, 0
    %290 = vmatpush.msra.mxu0 0.0
    %291 = vmatpush.msra.mxu0 0.0
    %292 = vmatpush.msra.mxu0 0.0
    %293 = vmatpush.msra.mxu0 0.0
    %294 = vmatpush.msra.mxu0 0.0
    %295 = vmatpush.msra.mxu0 0.0
    %296 = vmatpush.msra.mxu0 0.0
    %297 = vmatpush.msra.mxu0 0.0
    %298 = vmatpush.msra.mxu0 %v147
    %299 = vmatpush.msra.mxu0 %v146
    %300 = vmatpush.msra.mxu0 %v145
    %301 = vmatpush.msra.mxu0 %v144
    %302 = vmatpush.msra.mxu0 %v143
    %303 = vmatpush.msra.mxu0 %v142
    %304 = vmatpush.msra.mxu0 %v141
    %305 = vmatpush.msra.mxu0 %v140
    %306 = vmatmul.f32.gmra.mxu0 %v288
    %v307 = vpop.f32.mrf.mxu0
    %v308 = vadd.f32 %v286, %v307
    %309 = vdwg.mxu0
    %v310 = vtanh.pop %v308
    %312 = vrot.lane.b32.xlu0 %v310, 64
    %v313 = vpop.permute.xlu0 %312
    %v315 = vsel %vm150, %v285, %v313
    %s316 = scalar_lea.vmem [#allocation2], 16
    %317 = vst [vmem:[%s316] sm:$0xff] %v315
    %v318 = vsel %vm148, %v135, %v120
    %v319 = vsel %vm150, %v310, 0
    %321 = vmatpush.msra.mxu0 0.0
    %322 = vmatpush.msra.mxu0 0.0
    %323 = vmatpush.msra.mxu0 0.0
    %324 = vmatpush.msra.mxu0 0.0
    %325 = vmatpush.msra.mxu0 0.0
    %326 = vmatpush.msra.mxu0 0.0
    %327 = vmatpush.msra.mxu0 0.0
    %328 = vmatpush.msra.mxu0 0.0
    %329 = vmatpush.msra.mxu0 %v147
    %330 = vmatpush.msra.mxu0 %v146
    %331 = vmatpush.msra.mxu0 %v145
    %332 = vmatpush.msra.mxu0 %v144
    %333 = vmatpush.msra.mxu0 %v143
    %334 = vmatpush.msra.mxu0 %v142
    %335 = vmatpush.msra.mxu0 %v141
    %336 = vmatpush.msra.mxu0 %v140
    %337 = vmatmul.f32.gmra.mxu0 %v319
    %v338 = vpop.f32.mrf.mxu0
    %v339 = vadd.f32 %v318, %v338
    %340 = vdwg.mxu0
    %v341 = vtanh.pop %v339
    %v342 = vsel %vm148, %v138, %v117
    %v344 = vsel %vm150, %v341, 0
    %346 = vmatpush.msra.mxu0 0.0
    %347 = vmatpush.msra.mxu0 0.0
    %348 = vmatpush.msra.mxu0 0.0
    %349 = vmatpush.msra.mxu0 0.0
    %350 = vmatpush.msra.mxu0 0.0
    %351 = vmatpush.msra.mxu0 0.0
    %352 = vmatpush.msra.mxu0 0.0
    %353 = vmatpush.msra.mxu0 0.0
    %354 = vmatpush.msra.mxu0 %v147
    %355 = vmatpush.msra.mxu0 %v146
    %356 = vmatpush.msra.mxu0 %v145
    %357 = vmatpush.msra.mxu0 %v144
    %358 = vmatpush.msra.mxu0 %v143
    %359 = vmatpush.msra.mxu0 %v142
    %360 = vmatpush.msra.mxu0 %v141
    %361 = vmatpush.msra.mxu0 %v140
    %362 = vmatmul.f32.gmra.mxu0 %v344
    %v363 = vpop.f32.mrf.mxu0
    %v364 = vadd.f32 %v342, %v363
    %365 = vdwg.mxu0
    %v366 = vtanh.pop %v364
    %368 = vrot.lane.b32.xlu0 %v366, 64
    %v369 = vpop.permute.xlu0 %368
    %v371 = vsel %vm150, %v341, %v369
    %s372 = scalar_lea.vmem [#allocation2], 24
    %373 = vst [vmem:[%s372] sm:$0xff] %v371
    %374 = vst.msk [vmem:[#allocation4] sm:$0xff] %vm150, %v366
    // Predicated region
    $region18: #{tpu_custom_call.1} parent=1 // pred_check
      _
    $region19: #{tpu_custom_call.1} parent=1 // pred_check_branch
      %376 = sbr.rel (0) target = $region21
    $region20: #{tpu_custom_call.1} parent=1 // pred_region
      %378 = vsyncadd [#allocation3], 0
      %s379 = sshll.u32 [#allocation2], 4
      %s380 = int_to_ptr.vmem [resolvable:$true] %s379
      %s381 = sshll.u32 %s4, 4
      %s382 = int_to_ptr.hbm [resolvable:$true] %s381
      %387 = dma.vmem_to_hbm [thread:$0]  %s380, 512, %s382, [#allocation3], 128, 128, 8
    $region21: #{tpu_custom_call.1} parent=1 // pred_fallthru
      _
    // Predicated region
    $region22: #{tpu_custom_call.1} parent=1 // pred_check
      _
    $region23: #{tpu_custom_call.1} parent=1 // pred_check_branch
      %389 = sbr.rel (0) target = $region25
    $region24: #{tpu_custom_call.1} parent=1 // pred_region
      %391 = vsyncadd [#allocation5], 0
      %s393 = sshll.u32 [#allocation4], 4
      %s394 = int_to_ptr.vmem [resolvable:$true] %s393
      %s395 = sshll.u32 %s5, 4
      %s396 = int_to_ptr.hbm [resolvable:$true] %s395
      %398 = dma.vmem_to_hbm [thread:$0]  %s394, 128, %s396, [#allocation5]
    $region25: #{tpu_custom_call.1} parent=1 // pred_fallthru
      _
    // Predicated region
    $region26: #{tpu_custom_call.1} parent=1 // pred_check
      _
    $region27: #{tpu_custom_call.1} parent=1 // pred_check_branch
      %400 = sbr.rel (0) target = $region29
    $region28: #{tpu_custom_call.1} parent=1 // pred_region
      %402 = dma.done [#allocation3], 512
    $region29: #{tpu_custom_call.1} parent=1 // pred_fallthru
      _
    // Predicated region
    $region30: #{tpu_custom_call.1} parent=1 // pred_check
      _
    $region31: #{tpu_custom_call.1} parent=1 // pred_check_branch
      %404 = sbr.rel (0) target = $region33
    $region32: #{tpu_custom_call.1} parent=1 // pred_region
      %406 = dma.done [#allocation5], 128
    $region33: #{tpu_custom_call.1} parent=1 // pred_fallthru
      _
    %407 = vsyncpa [#allocation3], 1
    %408 = vsyncpa [#allocation5], 1

</llo_original>
